<compile_context>
chip_gen: v7x
topology: tpu7x:2x2x1
jax: 0.10.0
libtpu: 0.0.40
codegen_flags: <defaults>
</compile_context>

<pallas_src>
import math

import jax
import jax.numpy as jnp
from jax.experimental import pallas as pl
from jax.experimental.pallas import tpu as pltpu

LN_EPS = 1e-5


# --------------------------------------------------------------------------- #
# Kernel
# --------------------------------------------------------------------------- #
def _mlp_proj_kernel(x_ref, w1_ref, b1_ref, w2_ref, b2_ref, g_ref, beta_ref, o_ref):
    # ---- Linear 1 (clip_dim -> clip_dim), bf16 MXU + f32 accumulation ----
    h = jnp.dot(x_ref[...], w1_ref[...],
                preferred_element_type=jnp.float32) + b1_ref[...]

    # ---- GELU (exact / erf form, matching torch.nn.GELU default), f32 ----
    inv_sqrt2 = jnp.float32(1.0 / math.sqrt(2.0))
    h = 0.5 * h * (1.0 + jax.lax.erf(h * inv_sqrt2))

    # ---- Linear 2 (clip_dim -> cross_attention_dim), bf16 MXU + f32 acc ----
    y = jnp.dot(h.astype(w2_ref.dtype), w2_ref[...],
                preferred_element_type=jnp.float32) + b2_ref[...]

    # ---- LayerNorm over last dim: fused single-pass moments, f32 epilogue ----
    inv_d = jnp.float32(1.0 / y.shape[-1])
    s = jnp.sum(y, axis=-1, keepdims=True)
    ss = jnp.sum(y * y, axis=-1, keepdims=True)
    mean = s * inv_d
    var = jnp.maximum(ss * inv_d - mean * mean, 0.0)   # clamp tiny negative rounding
    out = (y - mean) * jax.lax.rsqrt(var + jnp.float32(LN_EPS)) * g_ref[...] + beta_ref[...]

    o_ref[...] = out.astype(o_ref.dtype)


# --------------------------------------------------------------------------- #
# Wrapper
# --------------------------------------------------------------------------- #
def _round_up(x, m):
    return ((x + m - 1) // m) * m


def _vmem_capacity_bytes():
    """Best-effort query of per-TensorCore VMEM capacity (None if unavailable)."""
    try:
        info = pltpu.get_tpu_info()
        for name in ("vmem_capacity_bytes", "vmem_size_bytes", "vmem_bytes"):
            v = getattr(info, name, None)
            if v:
                return int(v)
    except Exception:
        pass
    return None


def mlp_proj_pallas(x2d, w1, b1, w2, b2, gamma, beta, *,
                    out_dtype=jnp.float32, tm_cap=None):
    """x2d: (M, clip_dim) bf16.  Returns (M, cross_attention_dim) `out_dtype`."""
    m, d_in = x2d.shape
    d_out = w2.shape[1]

    # ---- Generation-aware row tile -------------------------------------- #
    cap = _vmem_capacity_bytes()
    big_vmem = cap is not None and cap >= 100 * (1 << 20)   # v5e/v6e: 128 MiB/TC
    if tm_cap is None:
        tm_cap = 1024 if big_vmem else 512                  # v7x / unknown: 64 MiB/TC

    tm = min(tm_cap, _round_up(m, 16))                      # bf16 sublane multiple
    # >= 2 grid steps so the M axis can shard across both v7x TensorCores.
    if m >= 32 and pl.cdiv(m, tm) < 2:
        tm = _round_up(pl.cdiv(m, 2), 16)
    grid = (pl.cdiv(m, tm),)                                # partial last block OK

    # ---- VMEM budget from the actual working set ------------------------ #
    out_bytes = jnp.dtype(out_dtype).itemsize
    weight_bytes = (d_in * d_in + d_in * d_out) * 2 * 2     # conservative: 2 buffers
    small_bytes = 8 * (d_in + 3 * d_out) * 4 * 2            # b1,b2,gamma,beta (padded)
    tile_bytes = 2 * (tm * d_in * 2) + 2 * (tm * d_out * out_bytes)  # x/out dbl-buffered
    interm_bytes = 3 * tm * (d_in + d_out) * 4              # f32 h/y + temps
    needed = weight_bytes + small_bytes + tile_bytes + interm_bytes
    gen_cap = (96 if big_vmem else 44) << 20
    vmem_limit = int(min(max(needed * 1.25 + (2 << 20), 32 << 20), gen_cap))

    # ---- Cost estimate (scheduler hint) ---------------------------------- #
    flops = 2 * m * d_in * (d_in + d_out) + 12 * m * (d_in + d_out)
    bytes_accessed = (
        m * d_in * 2                          # x (bf16)
        + (d_in * d_in + d_in * d_out) * 2    # weights (bf16)
        + (d_in + 3 * d_out) * 4              # b1, b2, gamma, beta (f32)
        + m * d_out * out_bytes               # output
    )
    cost = pl.CostEstimate(flops=flops,
                           transcendentals=m * (d_in + 1),
                           bytes_accessed=bytes_accessed)

    def _resident(arr, single_buffer):
        # Whole-array block, same block index every grid step -> stays in VMEM.
        if single_buffer:
            return pl.BlockSpec(arr.shape, lambda i: (0, 0),
                                pipeline_mode=pl.Buffered(1))
        return pl.BlockSpec(arr.shape, lambda i: (0, 0))

    def _build(single_buffer_weights):
        return pl.pallas_call(
            _mlp_proj_kernel,
            out_shape=jax.ShapeDtypeStruct((m, d_out), out_dtype),
            grid=grid,
            in_specs=[
                pl.BlockSpec((tm, d_in), lambda i: (i, 0)),   # x tile, pipelined
                _resident(w1, single_buffer_weights),
                _resident(b1, single_buffer_weights),
                _resident(w2, single_buffer_weights),
                _resident(b2, single_buffer_weights),
                _resident(gamma, single_buffer_weights),
                _resident(beta, single_buffer_weights),
            ],
            out_specs=pl.BlockSpec((tm, d_out), lambda i: (i, 0)),
            compiler_params=pltpu.CompilerParams(
                dimension_semantics=("parallel",),            # megacore sharding (v7x)
                vmem_limit_bytes=vmem_limit,
            ),
            cost_estimate=cost,
        )

    try:
        return _build(True)(x2d, w1, b1, w2, b2, gamma, beta)
    except Exception:
        # Fallback if single-buffer pipeline_mode is unsupported on this runtime.
        return _build(False)(x2d, w1, b1, w2, b2, gamma, beta)


# --------------------------------------------------------------------------- #
# Parameters / module-level API
# --------------------------------------------------------------------------- #
def init_params(key, clip_embeddings_dim, cross_attention_dim):
    """Mirrors torch.nn.Linear / nn.LayerNorm defaults. Weights stored bf16 once."""
    k1, k2, k3, k4 = jax.random.split(key, 4)
    bound = 1.0 / math.sqrt(clip_embeddings_dim)
    w1 = jax.random.uniform(k1, (clip_embeddings_dim, clip_embeddings_dim),
                            jnp.float32, -bound, bound).astype(jnp.bfloat16)
    b1 = jax.random.uniform(k2, (1, clip_embeddings_dim), jnp.float32, -bound, bound)
    w2 = jax.random.uniform(k3, (clip_embeddings_dim, cross_attention_dim),
                            jnp.float32, -bound, bound).astype(jnp.bfloat16)
    b2 = jax.random.uniform(k4, (1, cross_attention_dim), jnp.float32, -bound, bound)
    gamma = jnp.ones((1, cross_attention_dim), jnp.float32)
    beta = jnp.zeros((1, cross_attention_dim), jnp.float32)
    return w1, b1, w2, b2, gamma, beta


def mlp_proj_model(image_embeds, params, *, out_dtype=jnp.float32):
    """image_embeds: (..., clip_dim).  Flatten leading dims, run kernel, restore."""
    w1, b1, w2, b2, gamma, beta = params
    lead = image_embeds.shape[:-1]
    d_in = image_embeds.shape[-1]
    x2d = image_embeds.reshape(-1, d_in).astype(jnp.bfloat16)   # cast once, halves DMA
    out2d = mlp_proj_pallas(x2d, w1, b1, w2, b2, gamma, beta, out_dtype=out_dtype)
    return out2d.reshape(*lead, w2.shape[1])


def _reference(image_embeds, params):
    """Pure-JAX reference using the same bf16-input / f32-accumulation matmuls."""
    w1, b1, w2, b2, gamma, beta = params
    x = image_embeds.astype(jnp.bfloat16)
    h = jnp.dot(x, w1, preferred_element_type=jnp.float32) + b1
    h = 0.5 * h * (1.0 + jax.lax.erf(h * jnp.float32(1.0 / math.sqrt(2.0))))
    y = jnp.dot(h.astype(jnp.bfloat16), w2, preferred_element_type=jnp.float32) + b2
    mean = jnp.mean(y, axis=-1, keepdims=True)
    var = jnp.mean((y - mean) ** 2, axis=-1, keepdims=True)
    return (y - mean) * jax.lax.rsqrt(var + jnp.float32(LN_EPS)) * gamma + beta


if __name__ == "__main__":
    # Small, TPU-tile-friendly shapes consistent with the module:
    #   clip_embeddings_dim=128, cross_attention_dim=256, batch=2, seq=8
    clip_dim, cross_dim = 128, 256
    batch, seq = 2, 8

    key = jax.random.PRNGKey(0)
    k_params, k_x = jax.random.split(key)
    params = init_params(k_params, clip_dim, cross_dim)
    image_embeds = jax.random.normal(k_x, (batch, seq, clip_dim), jnp.float32)

    out = mlp_proj_model(image_embeds, params)
    out = jax.block_until_ready(out)

    ref = _reference(image_embeds, params)
    assert out.shape == (batch, seq, cross_dim), out.shape
    assert jnp.allclose(out, ref, atol=5e-3, rtol=5e-3), "mismatch vs reference"

    print("KERNEL_OK")
</pallas_src>

<mosaic_0001>
module attributes {stable_mosaic.version = 11 : i64} {
  func.func @_mlp_proj_kernel(%arg0: i32, %arg1: memref<16x128xbf16, #tpu.memory_space<vmem>>, %arg2: memref<128x128xbf16, #tpu.memory_space<vmem>>, %arg3: memref<1x128xf32, #tpu.memory_space<vmem>>, %arg4: memref<128x256xbf16, #tpu.memory_space<vmem>>, %arg5: memref<1x256xf32, #tpu.memory_space<vmem>>, %arg6: memref<1x256xf32, #tpu.memory_space<vmem>>, %arg7: memref<1x256xf32, #tpu.memory_space<vmem>>, %arg8: memref<16x256xf32, #tpu.memory_space<vmem>>) attributes {dimension_semantics = [#tpu.dimension_semantics<parallel>], iteration_bounds = array<i64: 1>, scalar_prefetch = 0 : i64, scratch_operands = 0 : i64, tpu.core_type = #tpu.core_type<tc>, window_params = [{transform_indices = @transform_0, window_bounds = array<i64: 16, 128>}, {pipeline_mode = #tpu.pipeline_mode<synchronous>, transform_indices = @transform_1, window_bounds = array<i64: 128, 128>}, {pipeline_mode = #tpu.pipeline_mode<synchronous>, transform_indices = @transform_2, window_bounds = array<i64: 1, 128>}, {pipeline_mode = #tpu.pipeline_mode<synchronous>, transform_indices = @transform_3, window_bounds = array<i64: 128, 256>}, {pipeline_mode = #tpu.pipeline_mode<synchronous>, transform_indices = @transform_4, window_bounds = array<i64: 1, 256>}, {pipeline_mode = #tpu.pipeline_mode<synchronous>, transform_indices = @transform_5, window_bounds = array<i64: 1, 256>}, {pipeline_mode = #tpu.pipeline_mode<synchronous>, transform_indices = @transform_6, window_bounds = array<i64: 1, 256>}, {transform_indices = @transform_7, window_bounds = array<i64: 16, 256>}]} {
    %c0 = arith.constant 0 : index
    %c0_0 = arith.constant 0 : index
    %0 = vector.load %arg1[%c0, %c0_0] : memref<16x128xbf16, #tpu.memory_space<vmem>>, vector<16x128xbf16>
    %c0_1 = arith.constant 0 : index
    %c0_2 = arith.constant 0 : index
    %1 = vector.load %arg2[%c0_1, %c0_2] : memref<128x128xbf16, #tpu.memory_space<vmem>>, vector<128x128xbf16>
    %cst = arith.constant dense<0.000000e+00> : vector<16x128xf32>
    %2 = tpu.matmul %0, %1, %cst {dimension_numbers = #tpu.dot_dimension_numbers<[1], [0], [0], [1], [0, 0, 1, 1], [], []>} : vector<16x128xbf16>, vector<128x128xbf16>, vector<16x128xf32> -> vector<16x128xf32>
    %c0_3 = arith.constant 0 : index
    %c0_4 = arith.constant 0 : index
    %3 = vector.load %arg3[%c0_3, %c0_4] : memref<1x128xf32, #tpu.memory_space<vmem>>, vector<1x128xf32>
    %4 = vector.broadcast %3 : vector<1x128xf32> to vector<16x128xf32>
    %5 = arith.addf %2, %4 : vector<16x128xf32>
    %cst_5 = arith.constant 5.000000e-01 : f32
    %6 = vector.broadcast %cst_5 : f32 to vector<16x128xf32>
    %7 = arith.mulf %6, %5 : vector<16x128xf32>
    %cst_6 = arith.constant 0.707106769 : f32
    %8 = vector.broadcast %cst_6 : f32 to vector<16x128xf32>
    %9 = arith.mulf %5, %8 : vector<16x128xf32>
    %10 = math.erf %9 : vector<16x128xf32>
    %cst_7 = arith.constant 1.000000e+00 : f32
    %11 = vector.broadcast %cst_7 : f32 to vector<16x128xf32>
    %12 = arith.addf %11, %10 : vector<16x128xf32>
    %13 = arith.mulf %7, %12 : vector<16x128xf32>
    %14 = arith.truncf %13 : vector<16x128xf32> to vector<16x128xbf16>
    %c0_8 = arith.constant 0 : index
    %c0_9 = arith.constant 0 : index
    %15 = vector.load %arg4[%c0_8, %c0_9] : memref<128x256xbf16, #tpu.memory_space<vmem>>, vector<128x256xbf16>
    %cst_10 = arith.constant dense<0.000000e+00> : vector<16x256xf32>
    %16 = tpu.matmul %14, %15, %cst_10 {dimension_numbers = #tpu.dot_dimension_numbers<[1], [0], [0], [1], [0, 0, 1, 1], [], []>} : vector<16x128xbf16>, vector<128x256xbf16>, vector<16x256xf32> -> vector<16x256xf32>
    %c0_11 = arith.constant 0 : index
    %c0_12 = arith.constant 0 : index
    %17 = vector.load %arg5[%c0_11, %c0_12] : memref<1x256xf32, #tpu.memory_space<vmem>>, vector<1x256xf32>
    %18 = vector.broadcast %17 : vector<1x256xf32> to vector<16x256xf32>
    %19 = arith.addf %16, %18 : vector<16x256xf32>
    %cst_13 = arith.constant dense<0.000000e+00> : vector<16xf32>
    %20 = vector.multi_reduction <add>, %19, %cst_13 [1] : vector<16x256xf32> to vector<16xf32>
    %21 = vector.shape_cast %20 : vector<16xf32> to vector<16x1xf32>
    %22 = arith.mulf %19, %19 : vector<16x256xf32>
    %cst_14 = arith.constant dense<0.000000e+00> : vector<16xf32>
    %23 = vector.multi_reduction <add>, %22, %cst_14 [1] : vector<16x256xf32> to vector<16xf32>
    %24 = vector.shape_cast %23 : vector<16xf32> to vector<16x1xf32>
    %cst_15 = arith.constant 3.906250e-03 : f32
    %25 = vector.broadcast %cst_15 : f32 to vector<16x1xf32>
    %26 = arith.mulf %21, %25 : vector<16x1xf32>
    %cst_16 = arith.constant 3.906250e-03 : f32
    %27 = vector.broadcast %cst_16 : f32 to vector<16x1xf32>
    %28 = arith.mulf %24, %27 : vector<16x1xf32>
    %29 = arith.mulf %26, %26 : vector<16x1xf32>
    %30 = arith.subf %28, %29 : vector<16x1xf32>
    %cst_17 = arith.constant 0.000000e+00 : f32
    %31 = vector.broadcast %cst_17 : f32 to vector<16x1xf32>
    %32 = arith.maximumf %30, %31 : vector<16x1xf32>
    %33 = vector.broadcast %26 : vector<16x1xf32> to vector<16x256xf32>
    %34 = arith.subf %19, %33 : vector<16x256xf32>
    %cst_18 = arith.constant 9.99999974E-6 : f32
    %35 = vector.broadcast %cst_18 : f32 to vector<16x1xf32>
    %36 = arith.addf %32, %35 : vector<16x1xf32>
    %37 = math.rsqrt %36 : vector<16x1xf32>
    %38 = vector.broadcast %37 : vector<16x1xf32> to vector<16x256xf32>
    %39 = arith.mulf %34, %38 : vector<16x256xf32>
    %c0_19 = arith.constant 0 : index
    %c0_20 = arith.constant 0 : index
    %40 = vector.load %arg6[%c0_19, %c0_20] : memref<1x256xf32, #tpu.memory_space<vmem>>, vector<1x256xf32>
    %41 = vector.broadcast %40 : vector<1x256xf32> to vector<16x256xf32>
    %42 = arith.mulf %39, %41 : vector<16x256xf32>
    %c0_21 = arith.constant 0 : index
    %c0_22 = arith.constant 0 : index
    %43 = vector.load %arg7[%c0_21, %c0_22] : memref<1x256xf32, #tpu.memory_space<vmem>>, vector<1x256xf32>
    %44 = vector.broadcast %43 : vector<1x256xf32> to vector<16x256xf32>
    %45 = arith.addf %42, %44 : vector<16x256xf32>
    %c0_23 = arith.constant 0 : index
    %c0_24 = arith.constant 0 : index
    %46 = vector.load %arg8[%c0_23, %c0_24] : memref<16x256xf32, #tpu.memory_space<vmem>>, vector<16x256xf32>
    tpu.vector_store %arg8[%c0_23, %c0_24], %45 {strides = array<i32>} : memref<16x256xf32, #tpu.memory_space<vmem>>, vector<16x256xf32>,
    return
  }
  func.func @transform_0(%arg0: i32) -> (i32, i32) {
    %c0_i32 = arith.constant 0 : i32
    %c0_i32_0 = arith.constant 0 : i32
    return %arg0, %c0_i32 : i32, i32
  }
  func.func @transform_1(%arg0: i32) -> (i32, i32) {
    %c0_i32 = arith.constant 0 : i32
    %c0_i32_0 = arith.constant 0 : i32
    %c0_i32_1 = arith.constant 0 : i32
    return %c0_i32, %c0_i32_0 : i32, i32
  }
  func.func @transform_2(%arg0: i32) -> (i32, i32) {
    %c0_i32 = arith.constant 0 : i32
    %c0_i32_0 = arith.constant 0 : i32
    %c0_i32_1 = arith.constant 0 : i32
    return %c0_i32, %c0_i32_0 : i32, i32
  }
  func.func @transform_3(%arg0: i32) -> (i32, i32) {
    %c0_i32 = arith.constant 0 : i32
    %c0_i32_0 = arith.constant 0 : i32
    %c0_i32_1 = arith.constant 0 : i32
    return %c0_i32, %c0_i32_0 : i32, i32
  }
  func.func @transform_4(%arg0: i32) -> (i32, i32) {
    %c0_i32 = arith.constant 0 : i32
    %c0_i32_0 = arith.constant 0 : i32
    %c0_i32_1 = arith.constant 0 : i32
    return %c0_i32, %c0_i32_0 : i32, i32
  }
  func.func @transform_5(%arg0: i32) -> (i32, i32) {
    %c0_i32 = arith.constant 0 : i32
    %c0_i32_0 = arith.constant 0 : i32
    %c0_i32_1 = arith.constant 0 : i32
    return %c0_i32, %c0_i32_0 : i32, i32
  }
  func.func @transform_6(%arg0: i32) -> (i32, i32) {
    %c0_i32 = arith.constant 0 : i32
    %c0_i32_0 = arith.constant 0 : i32
    %c0_i32_1 = arith.constant 0 : i32
    return %c0_i32, %c0_i32_0 : i32, i32
  }
  func.func @transform_7(%arg0: i32) -> (i32, i32) {
    %c0_i32 = arith.constant 0 : i32
    %c0_i32_0 = arith.constant 0 : i32
    return %arg0, %c0_i32 : i32, i32
  }
}

module attributes {stable_mosaic.version = 11 : i64} {
  func.func @_mlp_proj_kernel(%arg0: i32, %arg1: memref<16x128xbf16, #tpu.memory_space<vmem>>, %arg2: memref<128x128xbf16, #tpu.memory_space<vmem>>, %arg3: memref<1x128xf32, #tpu.memory_space<vmem>>, %arg4: memref<128x256xbf16, #tpu.memory_space<vmem>>, %arg5: memref<1x256xf32, #tpu.memory_space<vmem>>, %arg6: memref<1x256xf32, #tpu.memory_space<vmem>>, %arg7: memref<1x256xf32, #tpu.memory_space<vmem>>, %arg8: memref<16x256xf32, #tpu.memory_space<vmem>>) attributes {dimension_semantics = [#tpu.dimension_semantics<parallel>], iteration_bounds = array<i64: 1>, scalar_prefetch = 0 : i64, scratch_operands = 0 : i64, tpu.core_type = #tpu.core_type<tc>, window_params = [{transform_indices = @transform_0, window_bounds = array<i64: 16, 128>}, {pipeline_mode = #tpu.pipeline_mode<synchronous>, transform_indices = @transform_1, window_bounds = array<i64: 128, 128>}, {pipeline_mode = #tpu.pipeline_mode<synchronous>, transform_indices = @transform_2, window_bounds = array<i64: 1, 128>}, {pipeline_mode = #tpu.pipeline_mode<synchronous>, transform_indices = @transform_3, window_bounds = array<i64: 128, 256>}, {pipeline_mode = #tpu.pipeline_mode<synchronous>, transform_indices = @transform_4, window_bounds = array<i64: 1, 256>}, {pipeline_mode = #tpu.pipeline_mode<synchronous>, transform_indices = @transform_5, window_bounds = array<i64: 1, 256>}, {pipeline_mode = #tpu.pipeline_mode<synchronous>, transform_indices = @transform_6, window_bounds = array<i64: 1, 256>}, {transform_indices = @transform_7, window_bounds = array<i64: 16, 256>}]} {
    %c0 = arith.constant 0 : index
    %c0_0 = arith.constant 0 : index
    %0 = vector.load %arg1[%c0, %c0_0] : memref<16x128xbf16, #tpu.memory_space<vmem>>, vector<16x128xbf16>
    %c0_1 = arith.constant 0 : index
    %c0_2 = arith.constant 0 : index
    %1 = vector.load %arg2[%c0_1, %c0_2] : memref<128x128xbf16, #tpu.memory_space<vmem>>, vector<128x128xbf16>
    %cst = arith.constant dense<0.000000e+00> : vector<16x128xf32>
    %2 = tpu.matmul %0, %1, %cst {dimension_numbers = #tpu.dot_dimension_numbers<[1], [0], [0], [1], [0, 0, 1, 1], [], []>} : vector<16x128xbf16>, vector<128x128xbf16>, vector<16x128xf32> -> vector<16x128xf32>
    %c0_3 = arith.constant 0 : index
    %c0_4 = arith.constant 0 : index
    %3 = vector.load %arg3[%c0_3, %c0_4] : memref<1x128xf32, #tpu.memory_space<vmem>>, vector<1x128xf32>
    %4 = vector.broadcast %3 : vector<1x128xf32> to vector<16x128xf32>
    %5 = arith.addf %2, %4 : vector<16x128xf32>
    %cst_5 = arith.constant 5.000000e-01 : f32
    %6 = vector.broadcast %cst_5 : f32 to vector<16x128xf32>
    %7 = arith.mulf %6, %5 : vector<16x128xf32>
    %cst_6 = arith.constant 0.707106769 : f32
    %8 = vector.broadcast %cst_6 : f32 to vector<16x128xf32>
    %9 = arith.mulf %5, %8 : vector<16x128xf32>
    %10 = math.erf %9 : vector<16x128xf32>
    %cst_7 = arith.constant 1.000000e+00 : f32
    %11 = vector.broadcast %cst_7 : f32 to vector<16x128xf32>
    %12 = arith.addf %11, %10 : vector<16x128xf32>
    %13 = arith.mulf %7, %12 : vector<16x128xf32>
    %14 = arith.truncf %13 : vector<16x128xf32> to vector<16x128xbf16>
    %c0_8 = arith.constant 0 : index
    %c0_9 = arith.constant 0 : index
    %15 = vector.load %arg4[%c0_8, %c0_9] : memref<128x256xbf16, #tpu.memory_space<vmem>>, vector<128x256xbf16>
    %cst_10 = arith.constant dense<0.000000e+00> : vector<16x256xf32>
    %16 = tpu.matmul %14, %15, %cst_10 {dimension_numbers = #tpu.dot_dimension_numbers<[1], [0], [0], [1], [0, 0, 1, 1], [], []>} : vector<16x128xbf16>, vector<128x256xbf16>, vector<16x256xf32> -> vector<16x256xf32>
    %c0_11 = arith.constant 0 : index
    %c0_12 = arith.constant 0 : index
    %17 = vector.load %arg5[%c0_11, %c0_12] : memref<1x256xf32, #tpu.memory_space<vmem>>, vector<1x256xf32>
    %18 = vector.broadcast %17 : vector<1x256xf32> to vector<16x256xf32>
    %19 = arith.addf %16, %18 : vector<16x256xf32>
    %cst_13 = arith.constant dense<0.000000e+00> : vector<16xf32>
    %20 = vector.multi_reduction <add>, %19, %cst_13 [1] : vector<16x256xf32> to vector<16xf32>
    %21 = vector.shape_cast %20 : vector<16xf32> to vector<16x1xf32>
    %22 = arith.mulf %19, %19 : vector<16x256xf32>
    %cst_14 = arith.constant dense<0.000000e+00> : vector<16xf32>
    %23 = vector.multi_reduction <add>, %22, %cst_14 [1] : vector<16x256xf32> to vector<16xf32>
    %24 = vector.shape_cast %23 : vector<16xf32> to vector<16x1xf32>
    %cst_15 = arith.constant 3.906250e-03 : f32
    %25 = vector.broadcast %cst_15 : f32 to vector<16x1xf32>
    %26 = arith.mulf %21, %25 : vector<16x1xf32>
    %cst_16 = arith.constant 3.906250e-03 : f32
    %27 = vector.broadcast %cst_16 : f32 to vector<16x1xf32>
    %28 = arith.mulf %24, %27 : vector<16x1xf32>
    %29 = arith.mulf %26, %26 : vector<16x1xf32>
    %30 = arith.subf %28, %29 : vector<16x1xf32>
    %cst_17 = arith.constant 0.000000e+00 : f32
    %31 = vector.broadcast %cst_17 : f32 to vector<16x1xf32>
    %32 = arith.maximumf %30, %31 : vector<16x1xf32>
    %33 = vector.broadcast %26 : vector<16x1xf32> to vector<16x256xf32>
    %34 = arith.subf %19, %33 : vector<16x256xf32>
    %cst_18 = arith.constant 9.99999974E-6 : f32
    %35 = vector.broadcast %cst_18 : f32 to vector<16x1xf32>
    %36 = arith.addf %32, %35 : vector<16x1xf32>
    %37 = math.rsqrt %36 : vector<16x1xf32>
    %38 = vector.broadcast %37 : vector<16x1xf32> to vector<16x256xf32>
    %39 = arith.mulf %34, %38 : vector<16x256xf32>
    %c0_19 = arith.constant 0 : index
    %c0_20 = arith.constant 0 : index
    %40 = vector.load %arg6[%c0_19, %c0_20] : memref<1x256xf32, #tpu.memory_space<vmem>>, vector<1x256xf32>
    %41 = vector.broadcast %40 : vector<1x256xf32> to vector<16x256xf32>
    %42 = arith.mulf %39, %41 : vector<16x256xf32>
    %c0_21 = arith.constant 0 : index
    %c0_22 = arith.constant 0 : index
    %43 = vector.load %arg7[%c0_21, %c0_22] : memref<1x256xf32, #tpu.memory_space<vmem>>, vector<1x256xf32>
    %44 = vector.broadcast %43 : vector<1x256xf32> to vector<16x256xf32>
    %45 = arith.addf %42, %44 : vector<16x256xf32>
    %c0_23 = arith.constant 0 : index
    %c0_24 = arith.constant 0 : index
    %46 = vector.load %arg8[%c0_23, %c0_24] : memref<16x256xf32, #tpu.memory_space<vmem>>, vector<16x256xf32>
    tpu.vector_store %arg8[%c0_23, %c0_24], %45 {strides = array<i32>} : memref<16x256xf32, #tpu.memory_space<vmem>>, vector<16x256xf32>,
    return
  }
  func.func @transform_0(%arg0: i32) -> (i32, i32) {
    %c0_i32 = arith.constant 0 : i32
    %c0_i32_0 = arith.constant 0 : i32
    return %arg0, %c0_i32 : i32, i32
  }
  func.func @transform_1(%arg0: i32) -> (i32, i32) {
    %c0_i32 = arith.constant 0 : i32
    %c0_i32_0 = arith.constant 0 : i32
    %c0_i32_1 = arith.constant 0 : i32
    return %c0_i32, %c0_i32_0 : i32, i32
  }
  func.func @transform_2(%arg0: i32) -> (i32, i32) {
    %c0_i32 = arith.constant 0 : i32
    %c0_i32_0 = arith.constant 0 : i32
    %c0_i32_1 = arith.constant 0 : i32
    return %c0_i32, %c0_i32_0 : i32, i32
  }
  func.func @transform_3(%arg0: i32) -> (i32, i32) {
    %c0_i32 = arith.constant 0 : i32
    %c0_i32_0 = arith.constant 0 : i32
    %c0_i32_1 = arith.constant 0 : i32
    return %c0_i32, %c0_i32_0 : i32, i32
  }
  func.func @transform_4(%arg0: i32) -> (i32, i32) {
    %c0_i32 = arith.constant 0 : i32
    %c0_i32_0 = arith.constant 0 : i32
    %c0_i32_1 = arith.constant 0 : i32
    return %c0_i32, %c0_i32_0 : i32, i32
  }
  func.func @transform_5(%arg0: i32) -> (i32, i32) {
    %c0_i32 = arith.constant 0 : i32
    %c0_i32_0 = arith.constant 0 : i32
    %c0_i32_1 = arith.constant 0 : i32
    return %c0_i32, %c0_i32_0 : i32, i32
  }
  func.func @transform_6(%arg0: i32) -> (i32, i32) {
    %c0_i32 = arith.constant 0 : i32
    %c0_i32_0 = arith.constant 0 : i32
    %c0_i32_1 = arith.constant 0 : i32
    return %c0_i32, %c0_i32_0 : i32, i32
  }
  func.func @transform_7(%arg0: i32) -> (i32, i32) {
    %c0_i32 = arith.constant 0 : i32
    %c0_i32_0 = arith.constant 0 : i32
    return %arg0, %c0_i32 : i32, i32
  }
}

</mosaic_0001>

<llo_original>
// kernel: tpu_custom_call.1
$region0: #{tpu_custom_call.1}
  #allocation0 [shape = 'u32[]', space=smem, size = 0x4, offset = 0x4, fixed_abs, tag = 'smem constant byte address 0x4 - core index']
  #allocation1 [shape = 'u32[144,128]{1,0:T(1,128)}', space=vmem, size = 0x12000, scoped, tag = 'internal scratch']
  %s0 = inlined_call_operand.hbm [shape: bf16[16,128], index: 0, kind: input, shape index: {}]
  %s1 = inlined_call_operand.hbm [shape: bf16[128,128], index: 1, kind: input, shape index: {}]
  %s2 = inlined_call_operand.vmem [shape: f32[1,128], index: 2, kind: input, shape index: {}]
  %s3 = inlined_call_operand.hbm [shape: bf16[128,256], index: 3, kind: input, shape index: {}]
  %s4 = inlined_call_operand.vmem [shape: f32[1,256], index: 4, kind: input, shape index: {}]
  %s5 = inlined_call_operand.vmem [shape: f32[1,256], index: 5, kind: input, shape index: {}]
  %s6 = inlined_call_operand.vmem [shape: f32[1,256], index: 6, kind: input, shape index: {}]
  %s7 = inlined_call_operand.hbm [shape: f32[16,256], index: 7, kind: output, shape index: {}]
  %s8 = sld [smem:[#allocation0]]
  $region50: #{tpu_custom_call.1} parent=0
    _
  %s10 = ssub.s32 1, %s8
  %s11 = scalar_select 0, %s10, %s8
  $region1: #{tpu_custom_call.1} parent=0
    #allocation2 [shape = 'u8[4096]{0}', space=vmem, size = 0x1000, scoped, tag = 'input window, operand 0, single buffered']
    #allocation3 [shape = 's32[1]{0}', space=sflag, size = 0x4, scoped, tag = 'scoped memory for tpu_custom_call.1']
    #allocation4 [shape = 's32[1]{0}', space=sflag, size = 0x4, scoped, tag = 'scoped memory for tpu_custom_call.1']
    #allocation5 [shape = 'u8[32768]{0}', space=vmem, size = 0x8000, scoped, tag = 'input window, operand 1, single buffered']
    #allocation6 [shape = 's32[1]{0}', space=sflag, size = 0x4, scoped, tag = 'scoped memory for tpu_custom_call.1']
    #allocation7 [shape = 'u8[65536]{0}', space=vmem, size = 0x10000, scoped, tag = 'input window, operand 3, single buffered']
    #allocation8 [shape = 'u8[16384]{0}', space=vmem, size = 0x4000, scoped, tag = 'output window, operand 0, single buffered']
    %12 = vsyncpa [#allocation3], 0
    %13 = vsyncpa [#allocation6], 0
    %14 = vsyncpa [#allocation4], 0
    // Predicated region
    $region2: #{tpu_custom_call.1} parent=1 // pred_check
      _
    $region3: #{tpu_custom_call.1} parent=1 // pred_check_branch
      %16 = sbr.rel (0) target = $region5
    $region4: #{tpu_custom_call.1} parent=1 // pred_region
      %s18 = ssub.s32 128, 128
      %19 = vsyncadd [#allocation3], %s18
      %s20 = sshll.u32 [#allocation2], 4
      %s21 = int_to_ptr.vmem [resolvable:$true] %s20
      %26 = dma.hbm_to_vmem [thread:$0]  %s0, 128, %s21, [#allocation3], 64, 64, 4
    $region5: #{tpu_custom_call.1} parent=1 // pred_fallthru
      _
    // Predicated region
    $region6: #{tpu_custom_call.1} parent=1 // pred_check
      _
    $region7: #{tpu_custom_call.1} parent=1 // pred_check_branch
      %28 = sbr.rel (0) target = $region9
    $region8: #{tpu_custom_call.1} parent=1 // pred_region
      %s30 = ssub.s32 1024, 1024
      %31 = vsyncadd [#allocation6], %s30
      %s32 = sshll.u32 [#allocation5], 4
      %s33 = int_to_ptr.vmem [resolvable:$true] %s32
      %38 = dma.hbm_to_vmem [thread:$0]  %s1, 1024, %s33, [#allocation6], 64, 64, 4
    $region9: #{tpu_custom_call.1} parent=1 // pred_fallthru
      _
    // Predicated region
    $region10: #{tpu_custom_call.1} parent=1 // pred_check
      _
    $region11: #{tpu_custom_call.1} parent=1 // pred_check_branch
      %40 = sbr.rel (0) target = $region13
    $region12: #{tpu_custom_call.1} parent=1 // pred_region
      _
    $region13: #{tpu_custom_call.1} parent=1 // pred_fallthru
      _
    // Predicated region
    $region14: #{tpu_custom_call.1} parent=1 // pred_check
      _
    $region15: #{tpu_custom_call.1} parent=1 // pred_check_branch
      %42 = sbr.rel (0) target = $region17
    $region16: #{tpu_custom_call.1} parent=1 // pred_region
      %s44 = ssub.s32 2048, 2048
      %45 = vsyncadd [#allocation6], %s44
      %s46 = sshll.u32 [#allocation7], 4
      %s47 = int_to_ptr.vmem [resolvable:$true] %s46
      %52 = dma.hbm_to_vmem [thread:$0]  %s3, 2048, %s47, [#allocation6], 128, 128, 8
    $region17: #{tpu_custom_call.1} parent=1 // pred_fallthru
      _
    // Predicated region
    $region18: #{tpu_custom_call.1} parent=1 // pred_check
      _
    $region19: #{tpu_custom_call.1} parent=1 // pred_check_branch
      %54 = sbr.rel (0) target = $region21
    $region20: #{tpu_custom_call.1} parent=1 // pred_region
      _
    $region21: #{tpu_custom_call.1} parent=1 // pred_fallthru
      _
    // Predicated region
    $region22: #{tpu_custom_call.1} parent=1 // pred_check
      _
    $region23: #{tpu_custom_call.1} parent=1 // pred_check_branch
      %56 = sbr.rel (0) target = $region25
    $region24: #{tpu_custom_call.1} parent=1 // pred_region
      _
    $region25: #{tpu_custom_call.1} parent=1 // pred_fallthru
      _
    // Predicated region
    $region26: #{tpu_custom_call.1} parent=1 // pred_check
      _
    $region27: #{tpu_custom_call.1} parent=1 // pred_check_branch
      %58 = sbr.rel (0) target = $region29
    $region28: #{tpu_custom_call.1} parent=1 // pred_region
      _
    $region29: #{tpu_custom_call.1} parent=1 // pred_fallthru
      _
    // Predicated region
    $region30: #{tpu_custom_call.1} parent=1 // pred_check
      _
    $region31: #{tpu_custom_call.1} parent=1 // pred_check_branch
      %60 = sbr.rel (0) target = $region33
    $region32: #{tpu_custom_call.1} parent=1 // pred_region
      %61 = dma.done [#allocation3], 128
    $region33: #{tpu_custom_call.1} parent=1 // pred_fallthru
      _
    // Predicated region
    $region34: #{tpu_custom_call.1} parent=1 // pred_check
      _
    $region35: #{tpu_custom_call.1} parent=1 // pred_check_branch
      %63 = sbr.rel (0) target = $region37
    $region36: #{tpu_custom_call.1} parent=1 // pred_region
      %64 = dma.done [#allocation6], 1024
    $region37: #{tpu_custom_call.1} parent=1 // pred_fallthru
      _
    // Predicated region
    $region38: #{tpu_custom_call.1} parent=1 // pred_check
      _
    $region39: #{tpu_custom_call.1} parent=1 // pred_check_branch
      %66 = sbr.rel (0) target = $region41
    $region40: #{tpu_custom_call.1} parent=1 // pred_region
      %67 = dma.done [#allocation6], 2048
    $region41: #{tpu_custom_call.1} parent=1 // pred_fallthru
      _
    %v69 = vld [vmem:[#allocation2] sm:$0xf]
    %v70 = vld [vmem:[#allocation2 + $0x4] sm:$0xf]
    %v71 = vld [vmem:[#allocation5] sm:$0xf]
    %v72 = vld [vmem:[#allocation5 + $0x4] sm:$0xf]
    %v73 = vld [vmem:[#allocation5 + $0x8] sm:$0xf]
    %v74 = vld [vmem:[#allocation5 + $0xc] sm:$0xf]
    %v75 = vld [vmem:[#allocation5 + $0x10] sm:$0xf]
    %v76 = vld [vmem:[#allocation5 + $0x14] sm:$0xf]
    %v77 = vld [vmem:[#allocation5 + $0x18] sm:$0xf]
    %v78 = vld [vmem:[#allocation5 + $0x1c] sm:$0xf]
    %v79 = vld [vmem:[#allocation5 + $0x20] sm:$0xf]
    %v80 = vld [vmem:[#allocation5 + $0x24] sm:$0xf]
    %v81 = vld [vmem:[#allocation5 + $0x28] sm:$0xf]
    %v82 = vld [vmem:[#allocation5 + $0x2c] sm:$0xf]
    %v83 = vld [vmem:[#allocation5 + $0x30] sm:$0xf]
    %v84 = vld [vmem:[#allocation5 + $0x34] sm:$0xf]
    %v85 = vld [vmem:[#allocation5 + $0x38] sm:$0xf]
    %v86 = vld [vmem:[#allocation5 + $0x3c] sm:$0xf]
    %v87 = vld [vmem:[%s2] sm:$0x1]
    %v89 = vlaneseq
    %v90 = vshrl.u32 %v89, 7
    %v91 = vsub.s32 0, %v90
    %v92 = vrot.slane %v87, %v91
    %v96 = vunpack.c.l.b16 %v69
    %v97 = vunpack.c.l.b16 %v70
    %v98 = vpack.c.b16 %v97, %v96
    %v116 = vunpack.c.l.b16 %v71
    %v117 = vunpack.c.l.b16 %v72
    %v118 = vunpack.c.l.b16 %v73
    %v119 = vunpack.c.l.b16 %v74
    %v120 = vunpack.c.l.b16 %v75
    %v121 = vunpack.c.l.b16 %v76
    %v122 = vunpack.c.l.b16 %v77
    %v123 = vunpack.c.l.b16 %v78
    %v124 = vunpack.c.l.b16 %v79
    %v125 = vunpack.c.l.b16 %v80
    %v126 = vunpack.c.l.b16 %v81
    %v127 = vunpack.c.l.b16 %v82
    %v128 = vunpack.c.l.b16 %v83
    %v129 = vunpack.c.l.b16 %v84
    %v130 = vunpack.c.l.b16 %v85
    %v131 = vunpack.c.l.b16 %v86
    %v132 = vpack.c.b16 %v117, %v116
    %v133 = vpack.c.b16 %v119, %v118
    %v134 = vpack.c.b16 %v121, %v120
    %v135 = vpack.c.b16 %v123, %v122
    %v136 = vpack.c.b16 %v125, %v124
    %v137 = vpack.c.b16 %v127, %v126
    %v138 = vpack.c.b16 %v129, %v128
    %v139 = vpack.c.b16 %v131, %v130
    %148 = vmatprep.subr.bf16.mxu0 0
    %149 = vmatpush1.bf16.msra.mxu0 %v132
    %150 = vmatprep.subr.bf16.mxu0 0
    %151 = vmatpush1.bf16.msra.mxu0 %v133
    %152 = vmatprep.subr.bf16.mxu0 0
    %153 = vmatpush1.bf16.msra.mxu0 %v134
    %154 = vmatprep.subr.bf16.mxu0 0
    %155 = vmatpush1.bf16.msra.mxu0 %v135
    %156 = vmatprep.subr.bf16.mxu0 0
    %157 = vmatpush1.bf16.msra.mxu0 %v136
    %158 = vmatprep.subr.bf16.mxu0 0
    %159 = vmatpush1.bf16.msra.mxu0 %v137
    %160 = vmatprep.subr.bf16.mxu0 0
    %161 = vmatpush1.bf16.msra.mxu0 %v138
    %162 = vmatprep.subr.bf16.mxu0 0
    %163 = vmatpush1.bf16.msra.mxu0 %v139
    %164 = vmatprep.subr.bf16.mxu0 0
    %165 = vmatpush1.bf16.msra.mxu0 0
    %166 = vmatprep.subr.bf16.mxu0 0
    %167 = vmatpush1.bf16.msra.mxu0 0
    %168 = vmatprep.subr.bf16.mxu0 0
    %169 = vmatpush1.bf16.msra.mxu0 0
    %170 = vmatprep.subr.bf16.mxu0 0
    %171 = vmatpush1.bf16.msra.mxu0 0
    %172 = vmatprep.subr.bf16.mxu0 0
    %173 = vmatpush1.bf16.msra.mxu0 0
    %174 = vmatprep.subr.bf16.mxu0 0
    %175 = vmatpush1.bf16.msra.mxu0 0
    %176 = vmatprep.subr.bf16.mxu0 0
    %177 = vmatpush1.bf16.msra.mxu0 0
    %178 = vmatprep.subr.bf16.mxu0 0
    %179 = vmatpush1.bf16.msra.mxu0 0
    %180 = vmatprep.mubr.bf16.mxu0 0
    %181 = vmatmul.mubr.bf16.gmra.mrb[0].mxu0 %v98
    %v182 = vpop.f32.mrb[0].mxu0
    %v183 = vadd.f32 %v92, %v182
    %v184 = vpop.f32.mrb[0].mxu0
    %v185 = vpop.f32.mrb[0].mxu0
    %v186 = vadd.f32 %v92, %v185
    %v187 = vpop.f32.mrb[0].mxu0
    %188 = vdwg.mxu0
    %v189 = vmul.f32 %v183, 0.5
    %v190 = vmul.f32 %v186, 0.5
    %v191 = vmul.f32 %v183, 0.70710677
    %v192 = vmul.f32 %v186, 0.70710677
    %v193 = verf.f32.pop %v191
    %v194 = verf.f32.pop %v192
    %v195 = vadd.f32 %v193, 1.0
    %v196 = vadd.f32 %v194, 1.0
    %v197 = vmul.f32 %v189, %v195
    %v198 = vmul.f32 %v190, %v196
    %v199 = vpack.c.bf16 %v198, %v197
    %v200 = vld [vmem:[#allocation7] sm:$0xff]
    %v201 = vld [vmem:[#allocation7 + $0x8] sm:$0xff]
    %v202 = vld [vmem:[#allocation7 + $0x10] sm:$0xff]
    %v203 = vld [vmem:[#allocation7 + $0x18] sm:$0xff]
    %v204 = vld [vmem:[#allocation7 + $0x20] sm:$0xff]
    %v205 = vld [vmem:[#allocation7 + $0x28] sm:$0xff]
    %v206 = vld [vmem:[#allocation7 + $0x30] sm:$0xff]
    %v207 = vld [vmem:[#allocation7 + $0x38] sm:$0xff]
    %v208 = vld [vmem:[#allocation7 + $0x40] sm:$0xff]
    %v209 = vld [vmem:[#allocation7 + $0x48] sm:$0xff]
    %v210 = vld [vmem:[#allocation7 + $0x50] sm:$0xff]
    %v211 = vld [vmem:[#allocation7 + $0x58] sm:$0xff]
    %v212 = vld [vmem:[#allocation7 + $0x60] sm:$0xff]
    %v213 = vld [vmem:[#allocation7 + $0x68] sm:$0xff]
    %v214 = vld [vmem:[#allocation7 + $0x70] sm:$0xff]
    %v215 = vld [vmem:[#allocation7 + $0x78] sm:$0xff]
    %v216 = vld [vmem:[%s4] sm:$0x3]
    %v218 = vlaneseq
    %v219 = vshrl.u32 %v218, 7
    %v220 = vsub.s32 0, %v219
    %v221 = vrot.slane %v216, %v220
    %v222 = vlaneseq
    %v223 = vshrl.u32 %v222, 7
    %v224 = vsub.s32 1, %v223
    %v225 = vrot.slane %v216, %v224
    %v244 = vunpack.c.l.b16 %v200
    %v245 = vunpack.c.h.b16 %v200
    %v246 = vunpack.c.l.b16 %v201
    %v247 = vunpack.c.h.b16 %v201
    %v248 = vunpack.c.l.b16 %v202
    %v249 = vunpack.c.h.b16 %v202
    %v250 = vunpack.c.l.b16 %v203
    %v251 = vunpack.c.h.b16 %v203
    %v252 = vunpack.c.l.b16 %v204
    %v253 = vunpack.c.h.b16 %v204
    %v254 = vunpack.c.l.b16 %v205
    %v255 = vunpack.c.h.b16 %v205
    %v256 = vunpack.c.l.b16 %v206
    %v257 = vunpack.c.h.b16 %v206
    %v258 = vunpack.c.l.b16 %v207
    %v259 = vunpack.c.h.b16 %v207
    %v260 = vunpack.c.l.b16 %v208
    %v261 = vunpack.c.h.b16 %v208
    %v262 = vunpack.c.l.b16 %v209
    %v263 = vunpack.c.h.b16 %v209
    %v264 = vunpack.c.l.b16 %v210
    %v265 = vunpack.c.h.b16 %v210
    %v266 = vunpack.c.l.b16 %v211
    %v267 = vunpack.c.h.b16 %v211
    %v268 = vunpack.c.l.b16 %v212
    %v269 = vunpack.c.h.b16 %v212
    %v270 = vunpack.c.l.b16 %v213
    %v271 = vunpack.c.h.b16 %v213
    %v272 = vunpack.c.l.b16 %v214
    %v273 = vunpack.c.h.b16 %v214
    %v274 = vunpack.c.l.b16 %v215
    %v275 = vunpack.c.h.b16 %v215
    %v276 = vpack.c.b16 %v246, %v244
    %v277 = vpack.c.b16 %v247, %v245
    %v278 = vpack.c.b16 %v250, %v248
    %v279 = vpack.c.b16 %v251, %v249
    %v280 = vpack.c.b16 %v254, %v252
    %v281 = vpack.c.b16 %v255, %v253
    %v282 = vpack.c.b16 %v258, %v256
    %v283 = vpack.c.b16 %v259, %v257
    %v284 = vpack.c.b16 %v262, %v260
    %v285 = vpack.c.b16 %v263, %v261
    %v286 = vpack.c.b16 %v266, %v264
    %v287 = vpack.c.b16 %v267, %v265
    %v288 = vpack.c.b16 %v270, %v268
    %v289 = vpack.c.b16 %v271, %v269
    %v290 = vpack.c.b16 %v274, %v272
    %v291 = vpack.c.b16 %v275, %v273
    %308 = vmatprep.subr.bf16.mxu0 %v277
    %309 = vmatpush1.bf16.msra.mxu0 %v276
    %310 = vmatprep.subr.bf16.mxu0 %v279
    %311 = vmatpush1.bf16.msra.mxu0 %v278
    %312 = vmatprep.subr.bf16.mxu0 %v281
    %313 = vmatpush1.bf16.msra.mxu0 %v280
    %314 = vmatprep.subr.bf16.mxu0 %v283
    %315 = vmatpush1.bf16.msra.mxu0 %v282
    %316 = vmatprep.subr.bf16.mxu0 %v285
    %317 = vmatpush1.bf16.msra.mxu0 %v284
    %318 = vmatprep.subr.bf16.mxu0 %v287
    %319 = vmatpush1.bf16.msra.mxu0 %v286
    %320 = vmatprep.subr.bf16.mxu0 %v289
    %321 = vmatpush1.bf16.msra.mxu0 %v288
    %322 = vmatprep.subr.bf16.mxu0 %v291
    %323 = vmatpush1.bf16.msra.mxu0 %v290
    %324 = vmatprep.subr.bf16.mxu0 0
    %325 = vmatpush1.bf16.msra.mxu0 0
    %326 = vmatprep.subr.bf16.mxu0 0
    %327 = vmatpush1.bf16.msra.mxu0 0
    %328 = vmatprep.subr.bf16.mxu0 0
    %329 = vmatpush1.bf16.msra.mxu0 0
    %330 = vmatprep.subr.bf16.mxu0 0
    %331 = vmatpush1.bf16.msra.mxu0 0
    %332 = vmatprep.subr.bf16.mxu0 0
    %333 = vmatpush1.bf16.msra.mxu0 0
    %334 = vmatprep.subr.bf16.mxu0 0
    %335 = vmatpush1.bf16.msra.mxu0 0
    %336 = vmatprep.subr.bf16.mxu0 0
    %337 = vmatpush1.bf16.msra.mxu0 0
    %338 = vmatprep.subr.bf16.mxu0 0
    %339 = vmatpush1.bf16.msra.mxu0 0
    %340 = vmatprep.mubr.bf16.mxu0 0
    %341 = vmatmul.mubr.bf16.gmra.mrb[0].mxu0 %v199
    %v342 = vpop.f32.mrb[0].mxu0
    %v343 = vadd.f32 %v221, %v342
    %v344 = vpop.f32.mrb[0].mxu0
    %v345 = vadd.f32 %v225, %v344
    %v346 = vpop.f32.mrb[0].mxu0
    %v347 = vadd.f32 %v221, %v346
    %v348 = vpop.f32.mrb[0].mxu0
    %v349 = vadd.f32 %v225, %v348
    %350 = vdwg.mxu0
    %v351 = vadd.f32 %v343, %v345
    %352 = vadd.xlane.f32.xlu0 %v351
    %v353 = vpop.xlane.xlu0 %352
    %v354 = vadd.f32 %v347, %v349
    %355 = vadd.xlane.f32.xlu0 %v354
    %v356 = vpop.xlane.xlu0 %355
    %v357 = vmul.f32 %v343, %v343
    %v358 = vmul.f32 %v345, %v345
    %v359 = vmul.f32 %v347, %v347
    %v360 = vmul.f32 %v349, %v349
    %v361 = vadd.f32 %v357, %v358
    %362 = vadd.xlane.f32.xlu0 %v361
    %v363 = vpop.xlane.xlu0 %362
    %v364 = vadd.f32 %v359, %v360
    %365 = vadd.xlane.f32.xlu0 %v364
    %v366 = vpop.xlane.xlu0 %365
    %v367 = vmul.f32 %v353, 0.00390625
    %v368 = vmul.f32 %v356, 0.00390625
    %v369 = vmul.f32 %v363, 0.00390625
    %v370 = vmul.f32 %v366, 0.00390625
    %v371 = vmul.f32 %v367, %v367
    %v372 = vmul.f32 %v368, %v368
    %v373 = vsub.f32 %v369, %v371
    %v374 = vsub.f32 %v370, %v372
    %v375 = vmax.f32 %v373, 0.0
    %v376 = vmax.f32 %v374, 0.0
    %v377 = vsub.f32 %v343, %v367
    %v378 = vsub.f32 %v345, %v367
    %v379 = vsub.f32 %v347, %v368
    %v380 = vsub.f32 %v349, %v368
    %v381 = vadd.f32 %v375, 1e-05
    %v382 = vadd.f32 %v376, 1e-05
    %v383 = vrsqrt.pop %v381
    %v384 = vrsqrt.pop %v382
    %v385 = vmul.f32 %v377, %v383
    %v386 = vmul.f32 %v378, %v383
    %v387 = vmul.f32 %v379, %v384
    %v388 = vmul.f32 %v380, %v384
    %v389 = vld [vmem:[%s5] sm:$0x3]
    %v391 = vlaneseq
    %v392 = vshrl.u32 %v391, 7
    %v393 = vsub.s32 0, %v392
    %v394 = vrot.slane %v389, %v393
    %v395 = vlaneseq
    %v396 = vshrl.u32 %v395, 7
    %v397 = vsub.s32 1, %v396
    %v398 = vrot.slane %v389, %v397
    %v401 = vmul.f32 %v385, %v394
    %v402 = vmul.f32 %v386, %v398
    %v403 = vmul.f32 %v387, %v394
    %v404 = vmul.f32 %v388, %v398
    %v405 = vld [vmem:[%s6] sm:$0x3]
    %v407 = vlaneseq
    %v408 = vshrl.u32 %v407, 7
    %v409 = vsub.s32 0, %v408
    %v410 = vrot.slane %v405, %v409
    %v411 = vlaneseq
    %v412 = vshrl.u32 %v411, 7
    %v413 = vsub.s32 1, %v412
    %v414 = vrot.slane %v405, %v413
    %v417 = vadd.f32 %v401, %v410
    %v418 = vadd.f32 %v402, %v414
    %v419 = vadd.f32 %v403, %v410
    %v420 = vadd.f32 %v404, %v414
    %421 = vst [vmem:[#allocation8] sm:$0xff] %v417
    %422 = vst [vmem:[#allocation8 + $0x8] sm:$0xff] %v418
    %423 = vst [vmem:[#allocation8 + $0x10] sm:$0xff] %v419
    %424 = vst [vmem:[#allocation8 + $0x18] sm:$0xff] %v420
    // Predicated region
    $region42: #{tpu_custom_call.1} parent=1 // pred_check
      _
    $region43: #{tpu_custom_call.1} parent=1 // pred_check_branch
      %426 = sbr.rel (0) target = $region45
    $region44: #{tpu_custom_call.1} parent=1 // pred_region
      %s428 = ssub.s32 512, 512
      %429 = vsyncadd [#allocation4], %s428
      %s430 = sshll.u32 [#allocation8], 4
      %s431 = int_to_ptr.vmem [resolvable:$true] %s430
      %436 = dma.vmem_to_hbm [thread:$0]  %s431, 512, %s7, [#allocation4], 256, 256, 16
    $region45: #{tpu_custom_call.1} parent=1 // pred_fallthru
      _
    // Predicated region
    $region46: #{tpu_custom_call.1} parent=1 // pred_check
      _
    $region47: #{tpu_custom_call.1} parent=1 // pred_check_branch
      %438 = sbr.rel (0) target = $region49
    $region48: #{tpu_custom_call.1} parent=1 // pred_region
      %439 = dma.done [#allocation4], 512
    $region49: #{tpu_custom_call.1} parent=1 // pred_fallthru
      _
    %440 = vsyncpa [#allocation3], 1
    %441 = vsyncpa [#allocation6], 1
    %442 = vsyncpa [#allocation4], 1

// kernel: tpu_custom_call.1
$region0: #{tpu_custom_call.1}
  #allocation0 [shape = 'u32[]', space=smem, size = 0x4, offset = 0x4, fixed_abs, tag = 'smem constant byte address 0x4 - core index']
  #allocation1 [shape = 'u32[144,128]{1,0:T(1,128)}', space=vmem, size = 0x12000, scoped, tag = 'internal scratch']
  %s0 = inlined_call_operand.hbm [shape: bf16[16,128], index: 0, kind: input, shape index: {}]
  %s1 = inlined_call_operand.hbm [shape: bf16[128,128], index: 1, kind: input, shape index: {}]
  %s2 = inlined_call_operand.vmem [shape: f32[1,128], index: 2, kind: input, shape index: {}]
  %s3 = inlined_call_operand.hbm [shape: bf16[128,256], index: 3, kind: input, shape index: {}]
  %s4 = inlined_call_operand.vmem [shape: f32[1,256], index: 4, kind: input, shape index: {}]
  %s5 = inlined_call_operand.vmem [shape: f32[1,256], index: 5, kind: input, shape index: {}]
  %s6 = inlined_call_operand.vmem [shape: f32[1,256], index: 6, kind: input, shape index: {}]
  %s7 = inlined_call_operand.hbm [shape: f32[16,256], index: 7, kind: output, shape index: {}]
  %s8 = sld [smem:[#allocation0]]
  $region50: #{tpu_custom_call.1} parent=0
    _
  %s10 = ssub.s32 1, %s8
  %s11 = scalar_select 0, %s10, %s8
  $region1: #{tpu_custom_call.1} parent=0
    #allocation2 [shape = 'u8[4096]{0}', space=vmem, size = 0x1000, scoped, tag = 'input window, operand 0, single buffered']
    #allocation3 [shape = 's32[1]{0}', space=sflag, size = 0x4, scoped, tag = 'scoped memory for tpu_custom_call.1']
    #allocation4 [shape = 's32[1]{0}', space=sflag, size = 0x4, scoped, tag = 'scoped memory for tpu_custom_call.1']
    #allocation5 [shape = 'u8[32768]{0}', space=vmem, size = 0x8000, scoped, tag = 'input window, operand 1, single buffered']
    #allocation6 [shape = 's32[1]{0}', space=sflag, size = 0x4, scoped, tag = 'scoped memory for tpu_custom_call.1']
    #allocation7 [shape = 'u8[65536]{0}', space=vmem, size = 0x10000, scoped, tag = 'input window, operand 3, single buffered']
    #allocation8 [shape = 'u8[16384]{0}', space=vmem, size = 0x4000, scoped, tag = 'output window, operand 0, single buffered']
    %12 = vsyncpa [#allocation3], 0
    %13 = vsyncpa [#allocation6], 0
    %14 = vsyncpa [#allocation4], 0
    // Predicated region
    $region2: #{tpu_custom_call.1} parent=1 // pred_check
      _
    $region3: #{tpu_custom_call.1} parent=1 // pred_check_branch
      %16 = sbr.rel (0) target = $region5
    $region4: #{tpu_custom_call.1} parent=1 // pred_region
      %s18 = ssub.s32 128, 128
      %19 = vsyncadd [#allocation3], %s18
      %s20 = sshll.u32 [#allocation2], 4
      %s21 = int_to_ptr.vmem [resolvable:$true] %s20
      %26 = dma.hbm_to_vmem [thread:$0]  %s0, 128, %s21, [#allocation3], 64, 64, 4
    $region5: #{tpu_custom_call.1} parent=1 // pred_fallthru
      _
    // Predicated region
    $region6: #{tpu_custom_call.1} parent=1 // pred_check
      _
    $region7: #{tpu_custom_call.1} parent=1 // pred_check_branch
      %28 = sbr.rel (0) target = $region9
    $region8: #{tpu_custom_call.1} parent=1 // pred_region
      %s30 = ssub.s32 1024, 1024
      %31 = vsyncadd [#allocation6], %s30
      %s32 = sshll.u32 [#allocation5], 4
      %s33 = int_to_ptr.vmem [resolvable:$true] %s32
      %38 = dma.hbm_to_vmem [thread:$0]  %s1, 1024, %s33, [#allocation6], 64, 64, 4
    $region9: #{tpu_custom_call.1} parent=1 // pred_fallthru
      _
    // Predicated region
    $region10: #{tpu_custom_call.1} parent=1 // pred_check
      _
    $region11: #{tpu_custom_call.1} parent=1 // pred_check_branch
      %40 = sbr.rel (0) target = $region13
    $region12: #{tpu_custom_call.1} parent=1 // pred_region
      _
    $region13: #{tpu_custom_call.1} parent=1 // pred_fallthru
      _
    // Predicated region
    $region14: #{tpu_custom_call.1} parent=1 // pred_check
      _
    $region15: #{tpu_custom_call.1} parent=1 // pred_check_branch
      %42 = sbr.rel (0) target = $region17
    $region16: #{tpu_custom_call.1} parent=1 // pred_region
      %s44 = ssub.s32 2048, 2048
      %45 = vsyncadd [#allocation6], %s44
      %s46 = sshll.u32 [#allocation7], 4
      %s47 = int_to_ptr.vmem [resolvable:$true] %s46
      %52 = dma.hbm_to_vmem [thread:$0]  %s3, 2048, %s47, [#allocation6], 128, 128, 8
    $region17: #{tpu_custom_call.1} parent=1 // pred_fallthru
      _
    // Predicated region
    $region18: #{tpu_custom_call.1} parent=1 // pred_check
      _
    $region19: #{tpu_custom_call.1} parent=1 // pred_check_branch
      %54 = sbr.rel (0) target = $region21
    $region20: #{tpu_custom_call.1} parent=1 // pred_region
      _
    $region21: #{tpu_custom_call.1} parent=1 // pred_fallthru
      _
    // Predicated region
    $region22: #{tpu_custom_call.1} parent=1 // pred_check
      _
    $region23: #{tpu_custom_call.1} parent=1 // pred_check_branch
      %56 = sbr.rel (0) target = $region25
    $region24: #{tpu_custom_call.1} parent=1 // pred_region
      _
    $region25: #{tpu_custom_call.1} parent=1 // pred_fallthru
      _
    // Predicated region
    $region26: #{tpu_custom_call.1} parent=1 // pred_check
      _
    $region27: #{tpu_custom_call.1} parent=1 // pred_check_branch
      %58 = sbr.rel (0) target = $region29
    $region28: #{tpu_custom_call.1} parent=1 // pred_region
      _
    $region29: #{tpu_custom_call.1} parent=1 // pred_fallthru
      _
    // Predicated region
    $region30: #{tpu_custom_call.1} parent=1 // pred_check
      _
    $region31: #{tpu_custom_call.1} parent=1 // pred_check_branch
      %60 = sbr.rel (0) target = $region33
    $region32: #{tpu_custom_call.1} parent=1 // pred_region
      %61 = dma.done [#allocation3], 128
    $region33: #{tpu_custom_call.1} parent=1 // pred_fallthru
      _
    // Predicated region
    $region34: #{tpu_custom_call.1} parent=1 // pred_check
      _
    $region35: #{tpu_custom_call.1} parent=1 // pred_check_branch
      %63 = sbr.rel (0) target = $region37
    $region36: #{tpu_custom_call.1} parent=1 // pred_region
      %64 = dma.done [#allocation6], 1024
    $region37: #{tpu_custom_call.1} parent=1 // pred_fallthru
      _
    // Predicated region
    $region38: #{tpu_custom_call.1} parent=1 // pred_check
      _
    $region39: #{tpu_custom_call.1} parent=1 // pred_check_branch
      %66 = sbr.rel (0) target = $region41
    $region40: #{tpu_custom_call.1} parent=1 // pred_region
      %67 = dma.done [#allocation6], 2048
    $region41: #{tpu_custom_call.1} parent=1 // pred_fallthru
      _
    %v69 = vld [vmem:[#allocation2] sm:$0xf]
    %v70 = vld [vmem:[#allocation2 + $0x4] sm:$0xf]
    %v71 = vld [vmem:[#allocation5] sm:$0xf]
    %v72 = vld [vmem:[#allocation5 + $0x4] sm:$0xf]
    %v73 = vld [vmem:[#allocation5 + $0x8] sm:$0xf]
    %v74 = vld [vmem:[#allocation5 + $0xc] sm:$0xf]
    %v75 = vld [vmem:[#allocation5 + $0x10] sm:$0xf]
    %v76 = vld [vmem:[#allocation5 + $0x14] sm:$0xf]
    %v77 = vld [vmem:[#allocation5 + $0x18] sm:$0xf]
    %v78 = vld [vmem:[#allocation5 + $0x1c] sm:$0xf]
    %v79 = vld [vmem:[#allocation5 + $0x20] sm:$0xf]
    %v80 = vld [vmem:[#allocation5 + $0x24] sm:$0xf]
    %v81 = vld [vmem:[#allocation5 + $0x28] sm:$0xf]
    %v82 = vld [vmem:[#allocation5 + $0x2c] sm:$0xf]
    %v83 = vld [vmem:[#allocation5 + $0x30] sm:$0xf]
    %v84 = vld [vmem:[#allocation5 + $0x34] sm:$0xf]
    %v85 = vld [vmem:[#allocation5 + $0x38] sm:$0xf]
    %v86 = vld [vmem:[#allocation5 + $0x3c] sm:$0xf]
    %v87 = vld [vmem:[%s2] sm:$0x1]
    %v89 = vlaneseq
    %v90 = vshrl.u32 %v89, 7
    %v91 = vsub.s32 0, %v90
    %v92 = vrot.slane %v87, %v91
    %v96 = vunpack.c.l.b16 %v69
    %v97 = vunpack.c.l.b16 %v70
    %v98 = vpack.c.b16 %v97, %v96
    %v116 = vunpack.c.l.b16 %v71
    %v117 = vunpack.c.l.b16 %v72
    %v118 = vunpack.c.l.b16 %v73
    %v119 = vunpack.c.l.b16 %v74
    %v120 = vunpack.c.l.b16 %v75
    %v121 = vunpack.c.l.b16 %v76
    %v122 = vunpack.c.l.b16 %v77
    %v123 = vunpack.c.l.b16 %v78
    %v124 = vunpack.c.l.b16 %v79
    %v125 = vunpack.c.l.b16 %v80
    %v126 = vunpack.c.l.b16 %v81
    %v127 = vunpack.c.l.b16 %v82
    %v128 = vunpack.c.l.b16 %v83
    %v129 = vunpack.c.l.b16 %v84
    %v130 = vunpack.c.l.b16 %v85
    %v131 = vunpack.c.l.b16 %v86
    %v132 = vpack.c.b16 %v117, %v116
    %v133 = vpack.c.b16 %v119, %v118
    %v134 = vpack.c.b16 %v121, %v120
    %v135 = vpack.c.b16 %v123, %v122
    %v136 = vpack.c.b16 %v125, %v124
    %v137 = vpack.c.b16 %v127, %v126
    %v138 = vpack.c.b16 %v129, %v128
    %v139 = vpack.c.b16 %v131, %v130
    %148 = vmatprep.subr.bf16.mxu0 0
    %149 = vmatpush1.bf16.msra.mxu0 %v132
    %150 = vmatprep.subr.bf16.mxu0 0
    %151 = vmatpush1.bf16.msra.mxu0 %v133
    %152 = vmatprep.subr.bf16.mxu0 0
    %153 = vmatpush1.bf16.msra.mxu0 %v134
    %154 = vmatprep.subr.bf16.mxu0 0
    %155 = vmatpush1.bf16.msra.mxu0 %v135
    %156 = vmatprep.subr.bf16.mxu0 0
    %157 = vmatpush1.bf16.msra.mxu0 %v136
    %158 = vmatprep.subr.bf16.mxu0 0
    %159 = vmatpush1.bf16.msra.mxu0 %v137
    %160 = vmatprep.subr.bf16.mxu0 0
    %161 = vmatpush1.bf16.msra.mxu0 %v138
    %162 = vmatprep.subr.bf16.mxu0 0
    %163 = vmatpush1.bf16.msra.mxu0 %v139
    %164 = vmatprep.subr.bf16.mxu0 0
    %165 = vmatpush1.bf16.msra.mxu0 0
    %166 = vmatprep.subr.bf16.mxu0 0
    %167 = vmatpush1.bf16.msra.mxu0 0
    %168 = vmatprep.subr.bf16.mxu0 0
    %169 = vmatpush1.bf16.msra.mxu0 0
    %170 = vmatprep.subr.bf16.mxu0 0
    %171 = vmatpush1.bf16.msra.mxu0 0
    %172 = vmatprep.subr.bf16.mxu0 0
    %173 = vmatpush1.bf16.msra.mxu0 0
    %174 = vmatprep.subr.bf16.mxu0 0
    %175 = vmatpush1.bf16.msra.mxu0 0
    %176 = vmatprep.subr.bf16.mxu0 0
    %177 = vmatpush1.bf16.msra.mxu0 0
    %178 = vmatprep.subr.bf16.mxu0 0
    %179 = vmatpush1.bf16.msra.mxu0 0
    %180 = vmatprep.mubr.bf16.mxu0 0
    %181 = vmatmul.mubr.bf16.gmra.mrb[0].mxu0 %v98
    %v182 = vpop.f32.mrb[0].mxu0
    %v183 = vadd.f32 %v92, %v182
    %v184 = vpop.f32.mrb[0].mxu0
    %v185 = vpop.f32.mrb[0].mxu0
    %v186 = vadd.f32 %v92, %v185
    %v187 = vpop.f32.mrb[0].mxu0
    %188 = vdwg.mxu0
    %v189 = vmul.f32 %v183, 0.5
    %v190 = vmul.f32 %v186, 0.5
    %v191 = vmul.f32 %v183, 0.70710677
    %v192 = vmul.f32 %v186, 0.70710677
    %v193 = verf.f32.pop %v191
    %v194 = verf.f32.pop %v192
    %v195 = vadd.f32 %v193, 1.0
    %v196 = vadd.f32 %v194, 1.0
    %v197 = vmul.f32 %v189, %v195
    %v198 = vmul.f32 %v190, %v196
    %v199 = vpack.c.bf16 %v198, %v197
    %v200 = vld [vmem:[#allocation7] sm:$0xff]
    %v201 = vld [vmem:[#allocation7 + $0x8] sm:$0xff]
    %v202 = vld [vmem:[#allocation7 + $0x10] sm:$0xff]
    %v203 = vld [vmem:[#allocation7 + $0x18] sm:$0xff]
    %v204 = vld [vmem:[#allocation7 + $0x20] sm:$0xff]
    %v205 = vld [vmem:[#allocation7 + $0x28] sm:$0xff]
    %v206 = vld [vmem:[#allocation7 + $0x30] sm:$0xff]
    %v207 = vld [vmem:[#allocation7 + $0x38] sm:$0xff]
    %v208 = vld [vmem:[#allocation7 + $0x40] sm:$0xff]
    %v209 = vld [vmem:[#allocation7 + $0x48] sm:$0xff]
    %v210 = vld [vmem:[#allocation7 + $0x50] sm:$0xff]
    %v211 = vld [vmem:[#allocation7 + $0x58] sm:$0xff]
    %v212 = vld [vmem:[#allocation7 + $0x60] sm:$0xff]
    %v213 = vld [vmem:[#allocation7 + $0x68] sm:$0xff]
    %v214 = vld [vmem:[#allocation7 + $0x70] sm:$0xff]
    %v215 = vld [vmem:[#allocation7 + $0x78] sm:$0xff]
    %v216 = vld [vmem:[%s4] sm:$0x3]
    %v218 = vlaneseq
    %v219 = vshrl.u32 %v218, 7
    %v220 = vsub.s32 0, %v219
    %v221 = vrot.slane %v216, %v220
    %v222 = vlaneseq
    %v223 = vshrl.u32 %v222, 7
    %v224 = vsub.s32 1, %v223
    %v225 = vrot.slane %v216, %v224
    %v244 = vunpack.c.l.b16 %v200
    %v245 = vunpack.c.h.b16 %v200
    %v246 = vunpack.c.l.b16 %v201
    %v247 = vunpack.c.h.b16 %v201
    %v248 = vunpack.c.l.b16 %v202
    %v249 = vunpack.c.h.b16 %v202
    %v250 = vunpack.c.l.b16 %v203
    %v251 = vunpack.c.h.b16 %v203
    %v252 = vunpack.c.l.b16 %v204
    %v253 = vunpack.c.h.b16 %v204
    %v254 = vunpack.c.l.b16 %v205
    %v255 = vunpack.c.h.b16 %v205
    %v256 = vunpack.c.l.b16 %v206
    %v257 = vunpack.c.h.b16 %v206
    %v258 = vunpack.c.l.b16 %v207
    %v259 = vunpack.c.h.b16 %v207
    %v260 = vunpack.c.l.b16 %v208
    %v261 = vunpack.c.h.b16 %v208
    %v262 = vunpack.c.l.b16 %v209
    %v263 = vunpack.c.h.b16 %v209
    %v264 = vunpack.c.l.b16 %v210
    %v265 = vunpack.c.h.b16 %v210
    %v266 = vunpack.c.l.b16 %v211
    %v267 = vunpack.c.h.b16 %v211
    %v268 = vunpack.c.l.b16 %v212
    %v269 = vunpack.c.h.b16 %v212
    %v270 = vunpack.c.l.b16 %v213
    %v271 = vunpack.c.h.b16 %v213
    %v272 = vunpack.c.l.b16 %v214
    %v273 = vunpack.c.h.b16 %v214
    %v274 = vunpack.c.l.b16 %v215
    %v275 = vunpack.c.h.b16 %v215
    %v276 = vpack.c.b16 %v246, %v244
    %v277 = vpack.c.b16 %v247, %v245
    %v278 = vpack.c.b16 %v250, %v248
    %v279 = vpack.c.b16 %v251, %v249
    %v280 = vpack.c.b16 %v254, %v252
    %v281 = vpack.c.b16 %v255, %v253
    %v282 = vpack.c.b16 %v258, %v256
    %v283 = vpack.c.b16 %v259, %v257
    %v284 = vpack.c.b16 %v262, %v260
    %v285 = vpack.c.b16 %v263, %v261
    %v286 = vpack.c.b16 %v266, %v264
    %v287 = vpack.c.b16 %v267, %v265
    %v288 = vpack.c.b16 %v270, %v268
    %v289 = vpack.c.b16 %v271, %v269
    %v290 = vpack.c.b16 %v274, %v272
    %v291 = vpack.c.b16 %v275, %v273
    %308 = vmatprep.subr.bf16.mxu0 %v277
    %309 = vmatpush1.bf16.msra.mxu0 %v276
    %310 = vmatprep.subr.bf16.mxu0 %v279
    %311 = vmatpush1.bf16.msra.mxu0 %v278
    %312 = vmatprep.subr.bf16.mxu0 %v281
    %313 = vmatpush1.bf16.msra.mxu0 %v280
    %314 = vmatprep.subr.bf16.mxu0 %v283
    %315 = vmatpush1.bf16.msra.mxu0 %v282
    %316 = vmatprep.subr.bf16.mxu0 %v285
    %317 = vmatpush1.bf16.msra.mxu0 %v284
    %318 = vmatprep.subr.bf16.mxu0 %v287
    %319 = vmatpush1.bf16.msra.mxu0 %v286
    %320 = vmatprep.subr.bf16.mxu0 %v289
    %321 = vmatpush1.bf16.msra.mxu0 %v288
    %322 = vmatprep.subr.bf16.mxu0 %v291
    %323 = vmatpush1.bf16.msra.mxu0 %v290
    %324 = vmatprep.subr.bf16.mxu0 0
    %325 = vmatpush1.bf16.msra.mxu0 0
    %326 = vmatprep.subr.bf16.mxu0 0
    %327 = vmatpush1.bf16.msra.mxu0 0
    %328 = vmatprep.subr.bf16.mxu0 0
    %329 = vmatpush1.bf16.msra.mxu0 0
    %330 = vmatprep.subr.bf16.mxu0 0
    %331 = vmatpush1.bf16.msra.mxu0 0
    %332 = vmatprep.subr.bf16.mxu0 0
    %333 = vmatpush1.bf16.msra.mxu0 0
    %334 = vmatprep.subr.bf16.mxu0 0
    %335 = vmatpush1.bf16.msra.mxu0 0
    %336 = vmatprep.subr.bf16.mxu0 0
    %337 = vmatpush1.bf16.msra.mxu0 0
    %338 = vmatprep.subr.bf16.mxu0 0
    %339 = vmatpush1.bf16.msra.mxu0 0
    %340 = vmatprep.mubr.bf16.mxu0 0
    %341 = vmatmul.mubr.bf16.gmra.mrb[0].mxu0 %v199
    %v342 = vpop.f32.mrb[0].mxu0
    %v343 = vadd.f32 %v221, %v342
    %v344 = vpop.f32.mrb[0].mxu0
    %v345 = vadd.f32 %v225, %v344
    %v346 = vpop.f32.mrb[0].mxu0
    %v347 = vadd.f32 %v221, %v346
    %v348 = vpop.f32.mrb[0].mxu0
    %v349 = vadd.f32 %v225, %v348
    %350 = vdwg.mxu0
    %v351 = vadd.f32 %v343, %v345
    %352 = vadd.xlane.f32.xlu0 %v351
    %v353 = vpop.xlane.xlu0 %352
    %v354 = vadd.f32 %v347, %v349
    %355 = vadd.xlane.f32.xlu0 %v354
    %v356 = vpop.xlane.xlu0 %355
    %v357 = vmul.f32 %v343, %v343
    %v358 = vmul.f32 %v345, %v345
    %v359 = vmul.f32 %v347, %v347
    %v360 = vmul.f32 %v349, %v349
    %v361 = vadd.f32 %v357, %v358
    %362 = vadd.xlane.f32.xlu0 %v361
    %v363 = vpop.xlane.xlu0 %362
    %v364 = vadd.f32 %v359, %v360
    %365 = vadd.xlane.f32.xlu0 %v364
    %v366 = vpop.xlane.xlu0 %365
    %v367 = vmul.f32 %v353, 0.00390625
    %v368 = vmul.f32 %v356, 0.00390625
    %v369 = vmul.f32 %v363, 0.00390625
    %v370 = vmul.f32 %v366, 0.00390625
    %v371 = vmul.f32 %v367, %v367
    %v372 = vmul.f32 %v368, %v368
    %v373 = vsub.f32 %v369, %v371
    %v374 = vsub.f32 %v370, %v372
    %v375 = vmax.f32 %v373, 0.0
    %v376 = vmax.f32 %v374, 0.0
    %v377 = vsub.f32 %v343, %v367
    %v378 = vsub.f32 %v345, %v367
    %v379 = vsub.f32 %v347, %v368
    %v380 = vsub.f32 %v349, %v368
    %v381 = vadd.f32 %v375, 1e-05
    %v382 = vadd.f32 %v376, 1e-05
    %v383 = vrsqrt.pop %v381
    %v384 = vrsqrt.pop %v382
    %v385 = vmul.f32 %v377, %v383
    %v386 = vmul.f32 %v378, %v383
    %v387 = vmul.f32 %v379, %v384
    %v388 = vmul.f32 %v380, %v384
    %v389 = vld [vmem:[%s5] sm:$0x3]
    %v391 = vlaneseq
    %v392 = vshrl.u32 %v391, 7
    %v393 = vsub.s32 0, %v392
    %v394 = vrot.slane %v389, %v393
    %v395 = vlaneseq
    %v396 = vshrl.u32 %v395, 7
    %v397 = vsub.s32 1, %v396
    %v398 = vrot.slane %v389, %v397
    %v401 = vmul.f32 %v385, %v394
    %v402 = vmul.f32 %v386, %v398
    %v403 = vmul.f32 %v387, %v394
    %v404 = vmul.f32 %v388, %v398
    %v405 = vld [vmem:[%s6] sm:$0x3]
    %v407 = vlaneseq
    %v408 = vshrl.u32 %v407, 7
    %v409 = vsub.s32 0, %v408
    %v410 = vrot.slane %v405, %v409
    %v411 = vlaneseq
    %v412 = vshrl.u32 %v411, 7
    %v413 = vsub.s32 1, %v412
    %v414 = vrot.slane %v405, %v413
    %v417 = vadd.f32 %v401, %v410
    %v418 = vadd.f32 %v402, %v414
    %v419 = vadd.f32 %v403, %v410
    %v420 = vadd.f32 %v404, %v414
    %421 = vst [vmem:[#allocation8] sm:$0xff] %v417
    %422 = vst [vmem:[#allocation8 + $0x8] sm:$0xff] %v418
    %423 = vst [vmem:[#allocation8 + $0x10] sm:$0xff] %v419
    %424 = vst [vmem:[#allocation8 + $0x18] sm:$0xff] %v420
    // Predicated region
    $region42: #{tpu_custom_call.1} parent=1 // pred_check
      _
    $region43: #{tpu_custom_call.1} parent=1 // pred_check_branch
      %426 = sbr.rel (0) target = $region45
    $region44: #{tpu_custom_call.1} parent=1 // pred_region
      %s428 = ssub.s32 512, 512
      %429 = vsyncadd [#allocation4], %s428
      %s430 = sshll.u32 [#allocation8], 4
      %s431 = int_to_ptr.vmem [resolvable:$true] %s430
      %436 = dma.vmem_to_hbm [thread:$0]  %s431, 512, %s7, [#allocation4], 256, 256, 16
    $region45: #{tpu_custom_call.1} parent=1 // pred_fallthru
      _
    // Predicated region
    $region46: #{tpu_custom_call.1} parent=1 // pred_check
      _
    $region47: #{tpu_custom_call.1} parent=1 // pred_check_branch
      %438 = sbr.rel (0) target = $region49
    $region48: #{tpu_custom_call.1} parent=1 // pred_region
      %439 = dma.done [#allocation4], 512
    $region49: #{tpu_custom_call.1} parent=1 // pred_fallthru
      _
    %440 = vsyncpa [#allocation3], 1
    %441 = vsyncpa [#allocation6], 1
    %442 = vsyncpa [#allocation4], 1

</llo_original>
